<compile_context>
chip_gen: v7x
topology: tpu7x:2x2x1
jax: 0.10.0
libtpu: 0.0.40
codegen_flags: <defaults>
</compile_context>

<pallas_src>
import functools
from typing import NamedTuple

import numpy as np

import jax
import jax.numpy as jnp
from jax.experimental import pallas as pl
from jax.experimental.pallas import tpu as pltpu


def _round_up(x, m):
    return (x + m - 1) // m * m


# ----------------------------------------------------------------------------- #
# Pallas kernel: tiled GEMM, f32 accumulator, fused bias + ReLU + residual.
# ----------------------------------------------------------------------------- #
def _gemm_kernel(*refs, act, has_res):
    if has_res:
        x_ref, w_ref, b_ref, r_ref, o_ref, acc_ref = refs
    else:
        x_ref, w_ref, b_ref, o_ref, acc_ref = refs
        r_ref = None
    k = pl.program_id(2)

    @pl.when(k == 0)
    def _init():
        # Bias folded into accumulator init (no separate epilogue add).
        acc_ref[...] = jnp.broadcast_to(b_ref[...], acc_ref.shape)

    acc_ref[...] += jnp.dot(x_ref[...], w_ref[...],
                            preferred_element_type=jnp.float32)

    @pl.when(k == pl.num_programs(2) - 1)
    def _finalize():
        r = acc_ref[...]
        if act == "relu":
            # TODO(synk): BasicConv source not given; original repo may use GELU.
            r = jnp.maximum(r, 0.0)
        if has_res:
            r = r + r_ref[...].astype(jnp.float32)
        o_ref[...] = r.astype(o_ref.dtype)


def _pick_tiles(M, Kp, Np):
    """Generation-portable tiles: <=256x256 output tile, <=512 contraction tile.
    Double-buffered VMEM footprint stays ~2 MiB, well under the default scoped
    VMEM limit on v5e/v6e/v7x, so vmem_limit_bytes is left at its default."""
    tm = min(256, _round_up(M, 8))
    Mp = _round_up(M, tm)
    tn = 256 if Np % 256 == 0 else 128
    tk = 128
    for cand in (512, 384, 256, 128):   # Kp is a multiple of 128 -> always found
        if Kp % cand == 0:
            tk = cand
            break
    return tm, tk, tn, Mp


def _pallas_gemm(x, w, b, res, act, tm, tk, tn):
    """y = act(x @ w + b) [+ res].  x:(Mp,Kp) bf16, w:(Kp,Np) bf16, b:(1,Np) f32."""
    Mp, Kp = x.shape
    _, Np = w.shape
    grid = (Mp // tm, Np // tn, Kp // tk)

    in_specs = [
        pl.BlockSpec((tm, tk), lambda i, j, k: (i, k)),
        pl.BlockSpec((tk, tn), lambda i, j, k: (k, j)),
        pl.BlockSpec((1, tn), lambda i, j, k: (0, j)),
    ]
    operands = [x, w, b]
    if res is not None:
        # Block index is independent of k -> fetched once per (i, j) tile.
        in_specs.append(pl.BlockSpec((tm, tn), lambda i, j, k: (i, j)))
        operands.append(res)

    return pl.pallas_call(
        functools.partial(_gemm_kernel, act=act, has_res=res is not None),
        out_shape=jax.ShapeDtypeStruct((Mp, Np), jnp.bfloat16),
        grid=grid,
        in_specs=in_specs,
        out_specs=pl.BlockSpec((tm, tn), lambda i, j, k: (i, j)),
        scratch_shapes=[pltpu.VMEM((tm, tn), jnp.float32)],
        compiler_params=pltpu.CompilerParams(
            dimension_semantics=("parallel", "parallel", "arbitrary")),
    )(*operands)


# ----------------------------------------------------------------------------- #
# Convolution = im2col + fused Pallas GEMM (jit-cached per shape/config).
# ----------------------------------------------------------------------------- #
class ConvCfg(NamedTuple):
    kh: int
    kw: int
    stride: int
    pad: int
    relu: bool
    shuffle: bool   # True -> 2x pixel-shuffle output (fused transposed conv)
    cout: int
    ncols: int      # real GEMM output columns (cout, or 4*cout when shuffle)


@functools.partial(jax.jit, static_argnames=("cfg",))
def _conv_apply(x, wm, bm, residual, *, cfg):
    """x: NHWC activations.  wm:(Kp,Np) bf16 GEMM weights.  bm:(1,Np) f32 bias."""
    N, H, W, Cin = x.shape
    kh, kw, s, pad = cfg.kh, cfg.kw, cfg.stride, cfg.pad
    x = x.astype(jnp.bfloat16)
    xp = jnp.pad(x, ((0, 0), (pad, pad), (pad, pad), (0, 0))) if pad else x
    Ho = (H + 2 * pad - kh) // s + 1
    Wo = (W + 2 * pad - kw) // s + 1

    # TODO(synk): im2col patch matrix is still materialized (bf16, fused under
    # jit); a direct-conv Pallas kernel with a tap grid axis would remove it.
    cols = [xp[:, di:di + s * (Ho - 1) + 1:s, dj:dj + s * (Wo - 1) + 1:s, :]
            for di in range(kh) for dj in range(kw)]
    patches = cols[0] if len(cols) == 1 else jnp.concatenate(cols, axis=-1)

    M, K = N * Ho * Wo, kh * kw * Cin
    xm = patches.reshape(M, K)
    Kp, Np = wm.shape
    tm, tk, tn, Mp = _pick_tiles(M, Kp, Np)
    xm = jnp.pad(xm, ((0, Mp - M), (0, Kp - K)))

    rm = None
    if residual is not None:
        rm = jnp.pad(residual.astype(jnp.bfloat16).reshape(M, cfg.ncols),
                     ((0, Mp - M), (0, Np - cfg.ncols)))

    act = "relu" if cfg.relu else "none"
    ym = _pallas_gemm(xm, wm, bm, rm, act, tm, tk, tn)[:M, :cfg.ncols]

    if cfg.shuffle:
        c = cfg.cout
        y = ym.reshape(N, Ho, Wo, 2, 2, c)
        y = jnp.transpose(y, (0, 1, 3, 2, 4, 5)).reshape(N, 2 * Ho, 2 * Wo, c)
    else:
        y = ym.reshape(N, Ho, Wo, cfg.ncols)
    return y


# ----------------------------------------------------------------------------- #
# Parameter construction (deterministic).
# ----------------------------------------------------------------------------- #
class ParamGen:
    def __init__(self, seed):
        self._key = jax.random.PRNGKey(seed)

    def normal(self, shape, scale):
        self._key, sub = jax.random.split(self._key)
        return scale * jax.random.normal(sub, shape, jnp.float32)


def _tconv_equivalent_weight(w_t):
    """ConvTranspose2d(k=4, s=2, p=1) weight (Cin,Cout,4,4) -> equivalent
    stride-1 3x3 subpixel-conv weight of shape (9*Cin, 4*Cout).  Output phase
    (r,c) of out[2m+r, 2j+c] is a 2x2-tap conv over input rows/cols {m-1,m,m+1};
    scattering taps into a shared 3x3 patch lets all 4 phases share one GEMM."""
    cin, cout = w_t.shape[0], w_t.shape[1]
    w_eq = jnp.zeros((3, 3, cin, 2, 2, cout), w_t.dtype)
    row_taps = {0: ((0, 3), (1, 1)), 1: ((1, 2), (2, 0))}   # r -> ((dy, ky), ...)
    col_taps = {0: ((0, 3), (1, 1)), 1: ((1, 2), (2, 0))}   # c -> ((dx, kx), ...)
    for r, rts in row_taps.items():
        for c, cts in col_taps.items():
            for dy, ky in rts:
                for dx, kx in cts:
                    w_eq = w_eq.at[dy, dx, :, r, c, :].set(w_t[:, :, ky, kx])
    return w_eq.reshape(9 * cin, 4 * cout)


def make_basic_conv(pg, in_ch, out_ch, k, stride, relu, transpose=False):
    scale = 1.0 / np.sqrt(in_ch * k * k)
    if transpose:
        assert k == 4 and stride == 2, "SFNet only uses k=4, s=2 transposed convs"
        w_t = pg.normal((in_ch, out_ch, k, k), scale)
        wmat = _tconv_equivalent_weight(w_t)            # (9*Cin, 4*Cout)
        K, ncols = 9 * in_ch, 4 * out_ch
        cfg = ConvCfg(3, 3, 1, 1, relu, True, out_ch, ncols)
    else:
        w = pg.normal((out_ch, in_ch, k, k), scale)
        wmat = jnp.transpose(w, (2, 3, 1, 0)).reshape(k * k * in_ch, out_ch)
        K, ncols = k * k * in_ch, out_ch
        cfg = ConvCfg(k, k, stride, k // 2, relu, False, out_ch, ncols)
    bias = jnp.zeros((ncols,), jnp.float32)
    # Weights / bias are stored GEMM-ready and pre-padded once (no per-call pads).
    Kp, Np = _round_up(K, 128), _round_up(ncols, 128)
    wm = jnp.pad(wmat, ((0, Kp - K), (0, Np - ncols))).astype(jnp.bfloat16)
    bm = jnp.pad(bias, (0, Np - ncols)).reshape(1, Np)
    return dict(wm=wm, bm=bm, cfg=cfg)


def basic_conv(p, x, residual=None):
    return _conv_apply(x, p["wm"], p["bm"], residual, cfg=p["cfg"])


# TODO(synk): ResBlock source (mode-dependent frequency modules) not provided;
# using the classic conv-relu-conv residual block (skip-add fused into the GEMM).
def make_resblock(pg, ch):
    return dict(c1=make_basic_conv(pg, ch, ch, 3, 1, True),
                c2=make_basic_conv(pg, ch, ch, 3, 1, False))


def resblock(p, x):
    return basic_conv(p["c2"], basic_conv(p["c1"], x), residual=x)


def make_reslayers(pg, ch, num_res):
    return [make_resblock(pg, ch) for _ in range(num_res)]


def reslayers(ps, x):
    for p in ps:
        x = resblock(p, x)
    return x


# TODO(synk): FAM source not provided; using the MIMO-UNet definition
# x1 + conv(x1 * x2) with the skip-add fused into the GEMM epilogue.
def make_fam(pg, ch):
    return dict(merge=make_basic_conv(pg, ch, ch, 3, 1, False))


def fam(p, x1, x2):
    return basic_conv(p["merge"], x1 * x2, residual=x1)


# ----------------------------------------------------------------------------- #
# EBlock / DBlock / SFNet (all NHWC internally).
# ----------------------------------------------------------------------------- #
def make_eblock(pg, num_res):
    bc = 32
    return dict(
        feat=[make_basic_conv(pg, 3, bc, 3, 1, True),
              make_basic_conv(pg, bc, bc * 2, 3, 2, True),
              make_basic_conv(pg, bc * 2, bc * 4, 3, 2, True),
              make_basic_conv(pg, bc * 4, bc * 8, 3, 2, True),
              make_basic_conv(pg, bc * 8, bc * 8, 3, 1, True)],
        res=[make_reslayers(pg, bc, num_res),
             make_reslayers(pg, bc * 2, num_res),
             make_reslayers(pg, bc * 4, num_res),
             make_reslayers(pg, bc * 8, num_res)],
        FAM0=make_fam(pg, bc), FAM1=make_fam(pg, bc * 2),
        FAM2=make_fam(pg, bc * 4), FAM3=make_fam(pg, bc * 8),
        # TODO(synk): SCM1/SCM2/SCM3 source not provided; their outputs z2/z4/z8
        # are never consumed in the reference EBlock.forward, so they are omitted.
    )


def eblock_forward(p, x):
    # F.interpolate(scale_factor=0.5, mode='nearest') == ::2 subsampling.
    x_2 = x[:, ::2, ::2, :]
    x_4 = x_2[:, ::2, ::2, :]
    x_8 = x_4[:, ::2, ::2, :]
    x_ = basic_conv(p["feat"][0], x)
    res1 = reslayers(p["res"][0], x_)
    res1 = fam(p["FAM0"], x_, res1)
    z = basic_conv(p["feat"][1], res1)
    res2 = reslayers(p["res"][1], z)
    res2 = fam(p["FAM1"], z, res2)
    z = basic_conv(p["feat"][2], res2)
    res3 = reslayers(p["res"][2], z)
    res3 = fam(p["FAM2"], z, res3)
    z = basic_conv(p["feat"][3], res3)
    res4 = reslayers(p["res"][3], z)
    z = fam(p["FAM3"], z, res4)
    z = basic_conv(p["feat"][4], z)
    z = reslayers(p["res"][3], z)   # reference reuses res[3] here (tied weights)
    return dict(res1=res1, res2=res2, res3=res3, z=z,
                x=x, x_2=x_2, x_4=x_4, x_8=x_8)


def make_dblock(pg, num_res):
    bc = 32
    return dict(
        feat=[make_basic_conv(pg, bc * 8, bc * 4, 4, 2, True, transpose=True),
              make_basic_conv(pg, bc * 4, bc * 2, 4, 2, True, transpose=True),
              make_basic_conv(pg, bc * 2, bc, 4, 2, True, transpose=True),
              make_basic_conv(pg, bc, 3, 3, 1, False)],
        Convs=[make_basic_conv(pg, bc * 8, bc * 4, 1, 1, True),
               make_basic_conv(pg, bc * 4, bc * 2, 1, 1, True),
               make_basic_conv(pg, bc * 2, bc, 1, 1, True)],
        ConvsOut=[make_basic_conv(pg, bc * 8, 3, 3, 1, False),
                  make_basic_conv(pg, bc * 4, 3, 3, 1, False),
                  make_basic_conv(pg, bc * 2, 3, 3, 1, False)],
        res=[make_reslayers(pg, bc, num_res),
             make_reslayers(pg, bc * 2, num_res),
             make_reslayers(pg, bc * 4, num_res),
             make_reslayers(pg, bc * 8, num_res)],
        FAM0=make_fam(pg, bc), FAM1=make_fam(pg, bc * 2),
        FAM2=make_fam(pg, bc * 4), FAM3=make_fam(pg, bc * 8),
    )


def dblock_forward(p, x, x0):
    outputs = []
    z = fam(p["FAM3"], x["z"], x0["z"])
    z = reslayers(p["res"][3], z)
    # NOTE: reference computes z_ = ConvsOut[0](z) here but overwrites it before
    # use — dead code, skipped (outputs identical).
    z = basic_conv(p["feat"][0], z)
    res3 = fam(p["FAM2"], x["res3"], x0["res3"])
    z = jnp.concatenate([z, res3], axis=-1)
    z = basic_conv(p["Convs"][0], z)
    z = reslayers(p["res"][2], z)
    z_ = basic_conv(p["ConvsOut"][1], z)
    z = basic_conv(p["feat"][1], z)
    outputs.append(z_ + x["x_4"])
    res2 = fam(p["FAM1"], x["res2"], x0["res2"])
    z = jnp.concatenate([z, res2], axis=-1)
    z = basic_conv(p["Convs"][1], z)
    z = reslayers(p["res"][1], z)
    z_ = basic_conv(p["ConvsOut"][2], z)
    z = basic_conv(p["feat"][2], z)
    outputs.append(z_ + x["x_2"])
    res1 = fam(p["FAM0"], x["res1"], x0["res1"])
    z = jnp.concatenate([z, res1], axis=-1)
    z = basic_conv(p["Convs"][2], z)
    z = reslayers(p["res"][0], z)
    z = basic_conv(p["feat"][3], z)
    outputs.append(z + x["x"])
    return outputs


def make_sfnet(pg, num_res):
    return dict(encoder_gt=make_eblock(pg, num_res),
                encoder_x=make_eblock(pg, num_res),
                encoder_general=make_eblock(pg, num_res),
                decoder_noise=make_dblock(pg, num_res),
                decoder_gt=make_dblock(pg, num_res))


def sfnet_forward(params, x_nchw, gt_nchw):
    # Single NCHW<->NHWC transpose per boundary; bf16 activations internally.
    x = jnp.transpose(x_nchw, (0, 2, 3, 1)).astype(jnp.bfloat16)
    gt = jnp.transpose(gt_nchw, (0, 2, 3, 1)).astype(jnp.bfloat16)
    n = x.shape[0]

    x_feature = eblock_forward(params["encoder_x"], x)
    gt_feature = eblock_forward(params["encoder_gt"], x)   # reference feeds x here
    # The shared encoder_general runs once on a batched [x; gt] input (2x M per GEMM).
    both = eblock_forward(params["encoder_general"], jnp.concatenate([x, gt], axis=0))
    x0_feature = {k: v[:n] for k, v in both.items()}
    gt0_feature = {k: v[n:] for k, v in both.items()}

    output_n = dblock_forward(params["decoder_noise"], x_feature, x0_feature)
    output_gt = dblock_forward(params["decoder_gt"], gt_feature, gt0_feature)

    to_nchw = lambda t: jnp.transpose(t, (0, 3, 1, 2)).astype(jnp.float32)
    return [to_nchw(t) for t in output_n], [to_nchw(t) for t in output_gt]


# ----------------------------------------------------------------------------- #
if __name__ == "__main__":
    # Small num_res keeps the synthetic test light (constructor arg of SFNet).
    params = make_sfnet(ParamGen(42), num_res=2)

    key = jax.random.PRNGKey(0)
    k1, k2 = jax.random.split(key)
    x = jax.random.normal(k1, (2, 3, 16, 16), jnp.float32)
    gt = jax.random.normal(k2, (2, 3, 16, 16), jnp.float32)

    out_n, out_gt = sfnet_forward(params, x, gt)
    jax.block_until_ready((out_n, out_gt))

    assert out_n[0].shape == (2, 3, 4, 4) and out_gt[0].shape == (2, 3, 4, 4)
    assert out_n[1].shape == (2, 3, 8, 8) and out_gt[1].shape == (2, 3, 8, 8)
    assert out_n[2].shape == (2, 3, 16, 16) and out_gt[2].shape == (2, 3, 16, 16)
    assert all(bool(jnp.isfinite(o).all()) for o in (out_n + out_gt))
    print("KERNEL_OK")
</pallas_src>

<mosaic_0001>
module attributes {stable_mosaic.version = 11 : i64} {
  func.func @_gemm_kernel(%arg0: i32, %arg1: i32, %arg2: i32, %arg3: memref<256x128xbf16, #tpu.memory_space<vmem>>, %arg4: memref<128x128xbf16, #tpu.memory_space<vmem>>, %arg5: memref<1x128xf32, #tpu.memory_space<vmem>>, %arg6: memref<256x128xbf16, #tpu.memory_space<vmem>>, %arg7: memref<256x128xf32, #tpu.memory_space<vmem>>) attributes {dimension_semantics = [#tpu.dimension_semantics<parallel>, #tpu.dimension_semantics<parallel>, #tpu.dimension_semantics<arbitrary>], iteration_bounds = array<i64: 2, 1, 1>, scalar_prefetch = 0 : i64, scratch_operands = 1 : i64, tpu.core_type = #tpu.core_type<tc>, window_params = [{transform_indices = @transform_0, window_bounds = array<i64: 256, 128>}, {transform_indices = @transform_1, window_bounds = array<i64: 128, 128>}, {transform_indices = @transform_2, window_bounds = array<i64: 1, 128>}, {transform_indices = @transform_3, window_bounds = array<i64: 256, 128>}]} {
    %c0_i32 = arith.constant 0 : i32
    %0 = arith.cmpi eq, %arg2, %c0_i32 : i32
    %1 = arith.extui %0 : i1 to i32
    %c0_i32_0 = arith.constant 0 : i32
    %2 = arith.cmpi ne, %1, %c0_i32_0 : i32
    scf.if %2 {
      %c0_10 = arith.constant 0 : index
      %c0_11 = arith.constant 0 : index
      %12 = vector.load %arg5[%c0_10, %c0_11] : memref<1x128xf32, #tpu.memory_space<vmem>>, vector<1x128xf32>
      %13 = vector.shape_cast %12 : vector<1x128xf32> to vector<1x128xf32>
      %14 = vector.broadcast %13 : vector<1x128xf32> to vector<256x128xf32>
      %c0_12 = arith.constant 0 : index
      %c0_13 = arith.constant 0 : index
      %15 = vector.load %arg7[%c0_12, %c0_13] : memref<256x128xf32, #tpu.memory_space<vmem>>, vector<256x128xf32>
      tpu.vector_store %arg7[%c0_12, %c0_13], %14 {strides = array<i32>} : memref<256x128xf32, #tpu.memory_space<vmem>>, vector<256x128xf32>,
    } else {
    }
    %c0 = arith.constant 0 : index
    %c0_1 = arith.constant 0 : index
    %3 = vector.load %arg7[%c0, %c0_1] : memref<256x128xf32, #tpu.memory_space<vmem>>, vector<256x128xf32>
    %c0_2 = arith.constant 0 : index
    %c0_3 = arith.constant 0 : index
    %4 = vector.load %arg3[%c0_2, %c0_3] : memref<256x128xbf16, #tpu.memory_space<vmem>>, vector<256x128xbf16>
    %c0_4 = arith.constant 0 : index
    %c0_5 = arith.constant 0 : index
    %5 = vector.load %arg4[%c0_4, %c0_5] : memref<128x128xbf16, #tpu.memory_space<vmem>>, vector<128x128xbf16>
    %cst = arith.constant dense<0.000000e+00> : vector<256x128xf32>
    %6 = tpu.matmul %4, %5, %cst {dimension_numbers = #tpu.dot_dimension_numbers<[1], [0], [0], [1], [0, 0, 1, 1], [], []>} : vector<256x128xbf16>, vector<128x128xbf16>, vector<256x128xf32> -> vector<256x128xf32>
    %7 = arith.addf %3, %6 : vector<256x128xf32>
    %c0_6 = arith.constant 0 : index
    %c0_7 = arith.constant 0 : index
    %8 = vector.load %arg7[%c0_6, %c0_7] : memref<256x128xf32, #tpu.memory_space<vmem>>, vector<256x128xf32>
    tpu.vector_store %arg7[%c0_6, %c0_7], %7 {strides = array<i32>} : memref<256x128xf32, #tpu.memory_space<vmem>>, vector<256x128xf32>,
    %c0_i32_8 = arith.constant 0 : i32
    %9 = arith.cmpi eq, %arg2, %c0_i32_8 : i32
    %10 = arith.extui %9 : i1 to i32
    %c0_i32_9 = arith.constant 0 : i32
    %11 = arith.cmpi ne, %10, %c0_i32_9 : i32
    scf.if %11 {
      %c0_10 = arith.constant 0 : index
      %c0_11 = arith.constant 0 : index
      %12 = vector.load %arg7[%c0_10, %c0_11] : memref<256x128xf32, #tpu.memory_space<vmem>>, vector<256x128xf32>
      %cst_12 = arith.constant 0.000000e+00 : f32
      %13 = vector.broadcast %cst_12 : f32 to vector<256x128xf32>
      %14 = arith.maximumf %12, %13 : vector<256x128xf32>
      %15 = arith.truncf %14 : vector<256x128xf32> to vector<256x128xbf16>
      %c0_13 = arith.constant 0 : index
      %c0_14 = arith.constant 0 : index
      %16 = vector.load %arg6[%c0_13, %c0_14] : memref<256x128xbf16, #tpu.memory_space<vmem>>, vector<256x128xbf16>
      tpu.vector_store %arg6[%c0_13, %c0_14], %15 {strides = array<i32>} : memref<256x128xbf16, #tpu.memory_space<vmem>>, vector<256x128xbf16>,
    } else {
    }
    return
  }
  func.func @transform_0(%arg0: i32, %arg1: i32, %arg2: i32) -> (i32, i32) {
    %c0_i32 = arith.constant 0 : i32
    return %arg0, %arg2 : i32, i32
  }
  func.func @transform_1(%arg0: i32, %arg1: i32, %arg2: i32) -> (i32, i32) {
    %c0_i32 = arith.constant 0 : i32
    return %arg2, %arg1 : i32, i32
  }
  func.func @transform_2(%arg0: i32, %arg1: i32, %arg2: i32) -> (i32, i32) {
    %c0_i32 = arith.constant 0 : i32
    %c0_i32_0 = arith.constant 0 : i32
    return %c0_i32, %arg1 : i32, i32
  }
  func.func @transform_3(%arg0: i32, %arg1: i32, %arg2: i32) -> (i32, i32) {
    %c0_i32 = arith.constant 0 : i32
    return %arg0, %arg1 : i32, i32
  }
}

</mosaic_0001>

<llo_original>
// kernel: _conv_apply.1
$region0: #{_conv_apply.1}
  #allocation0 [shape = 'u32[]', space=smem, size = 0x4, offset = 0x4, fixed_abs, tag = 'smem constant byte address 0x4 - core index']
  #allocation1 [shape = 'u32[144,128]{1,0:T(1,128)}', space=vmem, size = 0x12000, scoped, tag = 'internal scratch']
  #allocation2 [shape = 'f32[256,128]{1,0:T(8,128)}', space=vmem, size = 0x20000, scoped, tag = 'scratch operand']
  %s0 = inlined_call_operand.vmem [shape: bf16[512,128], index: 0, kind: input, shape index: {}]
  %s1 = inlined_call_operand.vmem [shape: bf16[128,128], index: 1, kind: input, shape index: {}]
  %s2 = inlined_call_operand.vmem [shape: f32[1,128], index: 2, kind: input, shape index: {}]
  %s3 = inlined_call_operand.hbm [shape: bf16[512,128], index: 3, kind: output, shape index: {}]
  %s4 = sld [smem:[#allocation0]]
  $region53: #{_conv_apply.1} parent=0
    _
  %s6 = ssub.s32 1, %s4
  %s7 = scalar_select 0, %s6, %s4
  $region1: #{_conv_apply.1} parent=0
    #allocation3 [shape = 'u8[131072]{0}', space=vmem, size = 0x20000, scoped, tag = 'output window, operand 0']
    #allocation4 [shape = 's32[2]{0}', space=sflag, size = 0x8, scoped, tag = 'scoped memory for _conv_apply.1']
    %8 = vsyncpa [#allocation4], 0
    %s9 = scalar_lea.sflag [#allocation4], 1
    %10 = vsyncpa %s9, 0
    loop: start=0, step=1, limit=4
    $region2: #{_conv_apply.1} parent=1 // loop_pre_header
      _
    $region3: #{_conv_apply.1} parent=1 // loop_header
      %s12 = sphi 0, %s16
      %p13 = scmp.ge.s32.totalorder %s12, 4
      %s19 = sphi 0, %s38
      %s20 = sphi 0, %s34
      %s21 = sphi 0, %s30
      %s22 = sphi 0, %s19
      %s23 = sphi 0, %s20
      %s24 = sphi 0, %s21
      %s25 = sphi 0, %s22
      %s26 = sphi 0, %s23
      %s27 = sphi 0, %s24
      %s43 = sphi 0, %s45
      %s46 = sphi 0, %s43
      %s47 = sphi 0, %s46
      %s63 = sphi 0, %s47
      %s71 = sphi 0, %s73
      %s74 = sphi 0, %s71
      %s75 = sphi 0, %s74
      %s91 = sphi 0, %s75
      %s97 = sphi 0, %s99
      %s100 = sphi 0, %s97
      %s101 = sphi 0, %s100
      %s117 = sphi 0, %s101
      %s125 = sphi 0, %s127
      %s128 = sphi 0, %s125
      %s129 = sphi 0, %s128
      %s145 = sphi 0, %s129
    $region4: #{_conv_apply.1} parent=1 // loop_header_branch
      %15 = sbr.rel (%p13) target = $region8
    $region5: #{_conv_apply.1} parent=1 // loop_body
      %s17 = ssub.s32 %s12, 1
      %s18 = ssub.s32 %s12, 2
      %s28 = sadd.s32 1, %s21
      %p29 = scmp.ge.s32.totalorder %s28, 1
      %s30 = scalar_select %p29, 0, %s28
      %s31 = sadd.s32 1, %s20
      %s32 = scalar_select %p29, %s31, %s20
      %p33 = scmp.ge.s32.totalorder %s32, 1
      %s34 = scalar_select %p33, 0, %s32
      %s35 = sadd.s32 1, %s19
      %s36 = scalar_select %p33, %s35, %s19
      %p37 = scmp.ge.s32.totalorder %s36, 2
      %s38 = scalar_select %p37, 0, %s36
      %s39 = ssub.s32 %s19, %s38
      %s40 = ssub.s32 %s21, %s30
      %s41 = sor.u32 %s39, %s40
      %p42 = scmp.eq.s32.totalorder %s41, 0
      %s44 = sadd.s32 %s43, 1
      %s45 = scalar_select %p42, %s43, %s44
      %p48 = pneg %p42
      %p49 = scmp.eq.s32.totalorder %s12, 1
      %p50 = por %p48, %p49
      %p51 = scmp.ne.s32.totalorder %s43, %s46
      %p52 = scmp.eq.s32.totalorder %s12, 0
      %p53 = por %p51, %p52
      %p54 = scmp.ne.s32.totalorder %s43, %s46
      %p55 = scmp.eq.s32.totalorder %s17, 1
      %p56 = por %p54, %p55
      %p57 = scmp.ne.s32.totalorder %s46, %s47
      %p58 = scmp.eq.s32.totalorder %s17, 0
      %p59 = por %p57, %p58
      %p60 = scmp.ne.s32.totalorder %s46, %s47
      %p61 = scmp.eq.s32.totalorder %s18, 1
      %p62 = por %p60, %p61
      %p64 = scmp.ne.s32.totalorder %s47, %s63
      %p65 = scmp.eq.s32.totalorder %s18, 0
      %p66 = por %p64, %p65
      %s67 = ssub.s32 %s21, %s30
      %s68 = ssub.s32 %s20, %s34
      %s69 = sor.u32 %s67, %s68
      %p70 = scmp.eq.s32.totalorder %s69, 0
      %s72 = sadd.s32 %s71, 1
      %s73 = scalar_select %p70, %s71, %s72
      %p76 = pneg %p70
      %p77 = scmp.eq.s32.totalorder %s12, 1
      %p78 = por %p76, %p77
      %p79 = scmp.ne.s32.totalorder %s71, %s74
      %p80 = scmp.eq.s32.totalorder %s12, 0
      %p81 = por %p79, %p80
      %p82 = scmp.ne.s32.totalorder %s71, %s74
      %p83 = scmp.eq.s32.totalorder %s17, 1
      %p84 = por %p82, %p83
      %p85 = scmp.ne.s32.totalorder %s74, %s75
      %p86 = scmp.eq.s32.totalorder %s17, 0
      %p87 = por %p85, %p86
      %p88 = scmp.ne.s32.totalorder %s74, %s75
      %p89 = scmp.eq.s32.totalorder %s18, 1
      %p90 = por %p88, %p89
      %p92 = scmp.ne.s32.totalorder %s75, %s91
      %p93 = scmp.eq.s32.totalorder %s18, 0
      %p94 = por %p92, %p93
      %s95 = ssub.s32 %s20, %s34
      %p96 = scmp.eq.s32.totalorder %s95, 0
      %s98 = sadd.s32 %s97, 1
      %s99 = scalar_select %p96, %s97, %s98
      %p102 = pneg %p96
      %p103 = scmp.eq.s32.totalorder %s12, 1
      %p104 = por %p102, %p103
      %p105 = scmp.ne.s32.totalorder %s97, %s100
      %p106 = scmp.eq.s32.totalorder %s12, 0
      %p107 = por %p105, %p106
      %p108 = scmp.ne.s32.totalorder %s97, %s100
      %p109 = scmp.eq.s32.totalorder %s17, 1
      %p110 = por %p108, %p109
      %p111 = scmp.ne.s32.totalorder %s100, %s101
      %p112 = scmp.eq.s32.totalorder %s17, 0
      %p113 = por %p111, %p112
      %p114 = scmp.ne.s32.totalorder %s100, %s101
      %p115 = scmp.eq.s32.totalorder %s18, 1
      %p116 = por %p114, %p115
      %p118 = scmp.ne.s32.totalorder %s101, %s117
      %p119 = scmp.eq.s32.totalorder %s18, 0
      %p120 = por %p118, %p119
      %s121 = ssub.s32 %s19, %s38
      %s122 = ssub.s32 %s20, %s34
      %s123 = sor.u32 %s121, %s122
      %p124 = scmp.eq.s32.totalorder %s123, 0
      %s126 = sadd.s32 %s125, 1
      %s127 = scalar_select %p124, %s125, %s126
      %p130 = pneg %p124
      %p131 = scmp.eq.s32.totalorder %s12, 1
      %p132 = por %p130, %p131
      %p133 = scmp.ne.s32.totalorder %s125, %s128
      %p134 = scmp.eq.s32.totalorder %s12, 0
      %p135 = por %p133, %p134
      %p136 = scmp.ne.s32.totalorder %s125, %s128
      %p137 = scmp.eq.s32.totalorder %s17, 1
      %p138 = por %p136, %p137
      %p139 = scmp.ne.s32.totalorder %s128, %s129
      %p140 = scmp.eq.s32.totalorder %s17, 0
      %p141 = por %p139, %p140
      %p142 = scmp.ne.s32.totalorder %s128, %s129
      %p143 = scmp.eq.s32.totalorder %s18, 1
      %p144 = por %p142, %p143
      %p146 = scmp.ne.s32.totalorder %s129, %s145
      %p147 = scmp.eq.s32.totalorder %s18, 0
      %p148 = por %p146, %p147
      %p149 = scmp.le.s32.totalorder 1, %s12
      %p150 = scmp.lt.s32.totalorder %s12, 3
      %p151 = pnand %p149, %p150
      %p152 = pneg %p151
      // Predicated region
      $region9: #{_conv_apply.1} parent=5 // pred_check
        _
      $region10: #{_conv_apply.1} parent=5 // pred_check_branch
        %154 = sbr.rel (%p151) target = $region12
      $region11: #{_conv_apply.1} parent=5 // pred_region
        %s155 = ssub.s32 %s12, 1
        // Predicated region
        $region13: #{_conv_apply.1} parent=11 // pred_check
          %p156 = pneg %p87
        $region14: #{_conv_apply.1} parent=11 // pred_check_branch
          %158 = sbr.rel (%p156) target = $region16
        $region15: #{_conv_apply.1} parent=11 // pred_region
          %s159 = smul.u32 16, %s24
          %p160 = scmp.lt.s32.totalorder %s159, 15
          %s161 = scalar_select %p160, %s159, 15
          %p162 = scmp.lt.s32.totalorder %s23, 0
          %s163 = scalar_select %p162, %s23, 0
          %s164 = sadd.s32 %s163, %s161
          %s165 = smul.addr %s164, 4
          %s166 = scalar_lea.vmem %s1, %s165
          %s167 = smul.u32 16, %s24
        $region16: #{_conv_apply.1} parent=11 // pred_fallthru
          _
        // Predicated region
        $region17: #{_conv_apply.1} parent=11 // pred_check
          %p168 = pneg %p113
        $region18: #{_conv_apply.1} parent=11 // pred_check_branch
          %170 = sbr.rel (%p168) target = $region20
        $region19: #{_conv_apply.1} parent=11 // pred_region
          %p171 = scmp.lt.s32.totalorder %s23, 0
          %s172 = scalar_select %p171, %s23, 0
          %s173 = scalar_lea.vmem %s2, %s172
        $region20: #{_conv_apply.1} parent=11 // pred_fallthru
          _
      $region12: #{_conv_apply.1} parent=5 // pred_fallthru
        _
      %p174 = scmp.lt.s32.totalorder %s12, 2
      // Predicated region
      $region21: #{_conv_apply.1} parent=5 // pred_check
        %p175 = pneg %p174
      $region22: #{_conv_apply.1} parent=5 // pred_check_branch
        %177 = sbr.rel (%p175) target = $region24
      $region23: #{_conv_apply.1} parent=5 // pred_region
        // Predicated region
        $region25: #{_conv_apply.1} parent=23 // pred_check
          %p178 = pneg %p53
        $region26: #{_conv_apply.1} parent=23 // pred_check_branch
          %180 = sbr.rel (%p178) target = $region28
        $region27: #{_conv_apply.1} parent=23 // pred_region
          %s181 = smul.u32 32, %s19
          %p182 = scmp.lt.s32.totalorder %s181, 63
          %s183 = scalar_select %p182, %s181, 63
          %p184 = scmp.lt.s32.totalorder %s21, 0
          %s185 = scalar_select %p184, %s21, 0
          %s186 = sadd.s32 %s185, %s183
          %s187 = smul.addr %s186, 4
          %s188 = scalar_lea.vmem %s0, %s187
          %s189 = smul.u32 32, %s19
        $region28: #{_conv_apply.1} parent=23 // pred_fallthru
          _
      $region24: #{_conv_apply.1} parent=5 // pred_fallthru
        _
      %p190 = scmp.le.s32.totalorder 1, %s12
      %p191 = scmp.lt.s32.totalorder %s12, 3
      %p192 = pnand %p190, %p191
      %p193 = pneg %p192
      // Predicated region
      $region29: #{_conv_apply.1} parent=5 // pred_check
        _
      $region30: #{_conv_apply.1} parent=5 // pred_check_branch
        %195 = sbr.rel (%p192) target = $region32
      $region31: #{_conv_apply.1} parent=5 // pred_region
        %s196 = ssub.s32 %s12, 1
        %s197 = smul.u32 32, %s22
        %p198 = scmp.lt.s32.totalorder %s197, 63
        %s199 = scalar_select %p198, %s197, 63
        %p200 = scmp.lt.s32.totalorder %s24, 0
        %s201 = scalar_select %p200, %s24, 0
        %s202 = sadd.s32 %s201, %s199
        %s203 = smul.addr %s202, 4
        %s204 = scalar_lea.vmem %s0, %s203
        %p205 = pneg %p59
        %p206 = pneg %p56
        %s207 = smul.u32 16, %s24
        %p208 = scmp.lt.s32.totalorder %s207, 15
        %s209 = scalar_select %p208, %s207, 15
        %p210 = scmp.lt.s32.totalorder %s23, 0
        %s211 = scalar_select %p210, %s23, 0
        %s212 = sadd.s32 %s211, %s209
        %s213 = smul.addr %s212, 4
        %s214 = scalar_lea.vmem %s1, %s213
        %p215 = pneg %p87
        %p216 = pneg %p84
        %p217 = scmp.lt.s32.totalorder %s23, 0
        %s218 = scalar_select %p217, %s23, 0
        %s219 = scalar_lea.vmem %s2, %s218
        %p220 = pneg %p113
        %p221 = pneg %p110
        %p222 = pneg %p141
        %p223 = pneg %p138
        %s224 = sand.u32 %s128, 1
        %s225 = scalar_lea.sflag [#allocation4], %s224
        %s226 = sand.u32 %s128, 1
        %s227 = smul.addr %s226, 128
        %s228 = scalar_lea.vmem [#allocation3], %s227
        %s229 = smul.u32 32, %s22
        %p230 = scmp.lt.s32.totalorder %s229, 63
        %s231 = scalar_select %p230, %s229, 63
        %p232 = scmp.lt.s32.totalorder %s24, 0
        %s233 = scalar_select %p232, %s24, 0
        %s234 = sadd.s32 %s233, %s231
        %s235 = smul.addr %s234, 4
        %s236 = scalar_lea.vmem %s0, %s235
        %s237 = smul.u32 32, %s22
        %s238 = smul.u32 16, %s24
        %p239 = scmp.lt.s32.totalorder %s238, 15
        %s240 = scalar_select %p239, %s238, 15
        %p241 = scmp.lt.s32.totalorder %s23, 0
        %s242 = scalar_select %p241, %s23, 0
        %s243 = sadd.s32 %s242, %s240
        %s244 = smul.addr %s243, 4
        %s245 = scalar_lea.vmem %s1, %s244
        %s246 = smul.u32 16, %s24
        %p247 = scmp.lt.s32.totalorder %s23, 0
        %s248 = scalar_select %p247, %s23, 0
        %s249 = scalar_lea.vmem %s2, %s248
        %s250 = smul.u32 32, %s22
        %p252 = scmp.eq.s32.totalorder %s24, 0
        // Predicated region
        $region33: #{_conv_apply.1} parent=31 // pred_check
          %p253 = pneg %p252
        $region34: #{_conv_apply.1} parent=31 // pred_check_branch
          %255 = sbr.rel (%p253) target = $region36
        $region35: #{_conv_apply.1} parent=31 // pred_region
          %v256 = vld [vmem:[%s249] sm:$0x1]
          %v258 = vlaneseq
          %v259 = vshrl.u32 %v258, 7
          %v260 = vsub.s32 0, %v259
          %v261 = vrot.slane %v256, %v260
          %263 = vst [vmem:[#allocation2] sm:$0xff] %v261
          %264 = vst [vmem:[#allocation2 + $0x8] sm:$0xff] %v261
          %265 = vst [vmem:[#allocation2 + $0x10] sm:$0xff] %v261
          %266 = vst [vmem:[#allocation2 + $0x18] sm:$0xff] %v261
          %267 = vst [vmem:[#allocation2 + $0x20] sm:$0xff] %v261
          %268 = vst [vmem:[#allocation2 + $0x28] sm:$0xff] %v261
          %269 = vst [vmem:[#allocation2 + $0x30] sm:$0xff] %v261
          %270 = vst [vmem:[#allocation2 + $0x38] sm:$0xff] %v261
          %271 = vst [vmem:[#allocation2 + $0x40] sm:$0xff] %v261
          %272 = vst [vmem:[#allocation2 + $0x48] sm:$0xff] %v261
          %273 = vst [vmem:[#allocation2 + $0x50] sm:$0xff] %v261
          %274 = vst [vmem:[#allocation2 + $0x58] sm:$0xff] %v261
          %275 = vst [vmem:[#allocation2 + $0x60] sm:$0xff] %v261
          %276 = vst [vmem:[#allocation2 + $0x68] sm:$0xff] %v261
          %277 = vst [vmem:[#allocation2 + $0x70] sm:$0xff] %v261
          %278 = vst [vmem:[#allocation2 + $0x78] sm:$0xff] %v261
          %279 = vst [vmem:[#allocation2 + $0x80] sm:$0xff] %v261
          %280 = vst [vmem:[#allocation2 + $0x88] sm:$0xff] %v261
          %281 = vst [vmem:[#allocation2 + $0x90] sm:$0xff] %v261
          %282 = vst [vmem:[#allocation2 + $0x98] sm:$0xff] %v261
          %283 = vst [vmem:[#allocation2 + $0xa0] sm:$0xff] %v261
          %284 = vst [vmem:[#allocation2 + $0xa8] sm:$0xff] %v261
          %285 = vst [vmem:[#allocation2 + $0xb0] sm:$0xff] %v261
          %286 = vst [vmem:[#allocation2 + $0xb8] sm:$0xff] %v261
          %287 = vst [vmem:[#allocation2 + $0xc0] sm:$0xff] %v261
          %288 = vst [vmem:[#allocation2 + $0xc8] sm:$0xff] %v261
          %289 = vst [vmem:[#allocation2 + $0xd0] sm:$0xff] %v261
          %290 = vst [vmem:[#allocation2 + $0xd8] sm:$0xff] %v261
          %291 = vst [vmem:[#allocation2 + $0xe0] sm:$0xff] %v261
          %292 = vst [vmem:[#allocation2 + $0xe8] sm:$0xff] %v261
          %293 = vst [vmem:[#allocation2 + $0xf0] sm:$0xff] %v261
          %294 = vst [vmem:[#allocation2 + $0xf8] sm:$0xff] %v261
        $region36: #{_conv_apply.1} parent=31 // pred_fallthru
          _
        %v295 = vld [vmem:[#allocation2] sm:$0xff]
        %v296 = vld [vmem:[#allocation2 + $0x8] sm:$0xff]
        %v297 = vld [vmem:[#allocation2 + $0x10] sm:$0xff]
        %v298 = vld [vmem:[#allocation2 + $0x18] sm:$0xff]
        %v299 = vld [vmem:[#allocation2 + $0x20] sm:$0xff]
        %v300 = vld [vmem:[#allocation2 + $0x28] sm:$0xff]
        %v301 = vld [vmem:[#allocation2 + $0x30] sm:$0xff]
        %v302 = vld [vmem:[#allocation2 + $0x38] sm:$0xff]
        %v303 = vld [vmem:[#allocation2 + $0x40] sm:$0xff]
        %v304 = vld [vmem:[#allocation2 + $0x48] sm:$0xff]
        %v305 = vld [vmem:[#allocation2 + $0x50] sm:$0xff]
        %v306 = vld [vmem:[#allocation2 + $0x58] sm:$0xff]
        %v307 = vld [vmem:[#allocation2 + $0x60] sm:$0xff]
        %v308 = vld [vmem:[#allocation2 + $0x68] sm:$0xff]
        %v309 = vld [vmem:[#allocation2 + $0x70] sm:$0xff]
        %v310 = vld [vmem:[#allocation2 + $0x78] sm:$0xff]
        %v311 = vld [vmem:[#allocation2 + $0x80] sm:$0xff]
        %v312 = vld [vmem:[#allocation2 + $0x88] sm:$0xff]
        %v313 = vld [vmem:[#allocation2 + $0x90] sm:$0xff]
        %v314 = vld [vmem:[#allocation2 + $0x98] sm:$0xff]
        %v315 = vld [vmem:[#allocation2 + $0xa0] sm:$0xff]
        %v316 = vld [vmem:[#allocation2 + $0xa8] sm:$0xff]
        %v317 = vld [vmem:[#allocation2 + $0xb0] sm:$0xff]
        %v318 = vld [vmem:[#allocation2 + $0xb8] sm:$0xff]
        %v319 = vld [vmem:[#allocation2 + $0xc0] sm:$0xff]
        %v320 = vld [vmem:[#allocation2 + $0xc8] sm:$0xff]
        %v321 = vld [vmem:[#allocation2 + $0xd0] sm:$0xff]
        %v322 = vld [vmem:[#allocation2 + $0xd8] sm:$0xff]
        %v323 = vld [vmem:[#allocation2 + $0xe0] sm:$0xff]
        %v324 = vld [vmem:[#allocation2 + $0xe8] sm:$0xff]
        %v325 = vld [vmem:[#allocation2 + $0xf0] sm:$0xff]
        %v326 = vld [vmem:[#allocation2 + $0xf8] sm:$0xff]
        %v327 = vld [vmem:[%s236] sm:$0xf]
        %v328 = vld [vmem:[%s236 + $0x4] sm:$0xf]
        %v329 = vld [vmem:[%s236 + $0x8] sm:$0xf]
        %v330 = vld [vmem:[%s236 + $0xc] sm:$0xf]
        %v331 = vld [vmem:[%s236 + $0x10] sm:$0xf]
        %v332 = vld [vmem:[%s236 + $0x14] sm:$0xf]
        %v333 = vld [vmem:[%s236 + $0x18] sm:$0xf]
        %v334 = vld [vmem:[%s236 + $0x1c] sm:$0xf]
        %v335 = vld [vmem:[%s236 + $0x20] sm:$0xf]
        %v336 = vld [vmem:[%s236 + $0x24] sm:$0xf]
        %v337 = vld [vmem:[%s236 + $0x28] sm:$0xf]
        %v338 = vld [vmem:[%s236 + $0x2c] sm:$0xf]
        %v339 = vld [vmem:[%s236 + $0x30] sm:$0xf]
        %v340 = vld [vmem:[%s236 + $0x34] sm:$0xf]
        %v341 = vld [vmem:[%s236 + $0x38] sm:$0xf]
        %v342 = vld [vmem:[%s236 + $0x3c] sm:$0xf]
        %v343 = vld [vmem:[%s236 + $0x40] sm:$0xf]
        %v344 = vld [vmem:[%s236 + $0x44] sm:$0xf]
        %v345 = vld [vmem:[%s236 + $0x48] sm:$0xf]
        %v346 = vld [vmem:[%s236 + $0x4c] sm:$0xf]
        %v347 = vld [vmem:[%s236 + $0x50] sm:$0xf]
        %v348 = vld [vmem:[%s236 + $0x54] sm:$0xf]
        %v349 = vld [vmem:[%s236 + $0x58] sm:$0xf]
        %v350 = vld [vmem:[%s236 + $0x5c] sm:$0xf]
        %v351 = vld [vmem:[%s236 + $0x60] sm:$0xf]
        %v352 = vld [vmem:[%s236 + $0x64] sm:$0xf]
        %v353 = vld [vmem:[%s236 + $0x68] sm:$0xf]
        %v354 = vld [vmem:[%s236 + $0x6c] sm:$0xf]
        %v355 = vld [vmem:[%s236 + $0x70] sm:$0xf]
        %v356 = vld [vmem:[%s236 + $0x74] sm:$0xf]
        %v357 = vld [vmem:[%s236 + $0x78] sm:$0xf]
        %v358 = vld [vmem:[%s236 + $0x7c] sm:$0xf]
        %v359 = vld [vmem:[%s245] sm:$0xf]
        %v360 = vld [vmem:[%s245 + $0x4] sm:$0xf]
        %v361 = vld [vmem:[%s245 + $0x8] sm:$0xf]
        %v362 = vld [vmem:[%s245 + $0xc] sm:$0xf]
        %v363 = vld [vmem:[%s245 + $0x10] sm:$0xf]
        %v364 = vld [vmem:[%s245 + $0x14] sm:$0xf]
        %v365 = vld [vmem:[%s245 + $0x18] sm:$0xf]
        %v366 = vld [vmem:[%s245 + $0x1c] sm:$0xf]
        %v367 = vld [vmem:[%s245 + $0x20] sm:$0xf]
        %v368 = vld [vmem:[%s245 + $0x24] sm:$0xf]
        %v369 = vld [vmem:[%s245 + $0x28] sm:$0xf]
        %v370 = vld [vmem:[%s245 + $0x2c] sm:$0xf]
        %v371 = vld [vmem:[%s245 + $0x30] sm:$0xf]
        %v372 = vld [vmem:[%s245 + $0x34] sm:$0xf]
        %v373 = vld [vmem:[%s245 + $0x38] sm:$0xf]
        %v374 = vld [vmem:[%s245 + $0x3c] sm:$0xf]
        %v407 = vunpack.c.l.b16 %v327
        %v408 = vunpack.c.l.b16 %v328
        %v409 = vunpack.c.l.b16 %v329
        %v410 = vunpack.c.l.b16 %v330
        %v411 = vunpack.c.l.b16 %v331
        %v412 = vunpack.c.l.b16 %v332
        %v413 = vunpack.c.l.b16 %v333
        %v414 = vunpack.c.l.b16 %v334
        %v415 = vunpack.c.l.b16 %v335
        %v416 = vunpack.c.l.b16 %v336
        %v417 = vunpack.c.l.b16 %v337
        %v418 = vunpack.c.l.b16 %v338
        %v419 = vunpack.c.l.b16 %v339
        %v420 = vunpack.c.l.b16 %v340
        %v421 = vunpack.c.l.b16 %v341
        %v422 = vunpack.c.l.b16 %v342
        %v423 = vunpack.c.l.b16 %v343
        %v424 = vunpack.c.l.b16 %v344
        %v425 = vunpack.c.l.b16 %v345
        %v426 = vunpack.c.l.b16 %v346
        %v427 = vunpack.c.l.b16 %v347
        %v428 = vunpack.c.l.b16 %v348
        %v429 = vunpack.c.l.b16 %v349
        %v430 = vunpack.c.l.b16 %v350
        %v431 = vunpack.c.l.b16 %v351
        %v432 = vunpack.c.l.b16 %v352
        %v433 = vunpack.c.l.b16 %v353
        %v434 = vunpack.c.l.b16 %v354
        %v435 = vunpack.c.l.b16 %v355
        %v436 = vunpack.c.l.b16 %v356
        %v437 = vunpack.c.l.b16 %v357
        %v438 = vunpack.c.l.b16 %v358
        %v439 = vpack.c.b16 %v408, %v407
        %v440 = vpack.c.b16 %v410, %v409
        %v441 = vpack.c.b16 %v412, %v411
        %v442 = vpack.c.b16 %v414, %v413
        %v443 = vpack.c.b16 %v416, %v415
        %v444 = vpack.c.b16 %v418, %v417
        %v445 = vpack.c.b16 %v420, %v419
        %v446 = vpack.c.b16 %v422, %v421
        %v447 = vpack.c.b16 %v424, %v423
        %v448 = vpack.c.b16 %v426, %v425
        %v449 = vpack.c.b16 %v428, %v427
        %v450 = vpack.c.b16 %v430, %v429
        %v451 = vpack.c.b16 %v432, %v431
        %v452 = vpack.c.b16 %v434, %v433
        %v453 = vpack.c.b16 %v436, %v435
        %v454 = vpack.c.b16 %v438, %v437
        %v487 = vunpack.c.l.b16 %v359
        %v488 = vunpack.c.l.b16 %v360
        %v489 = vunpack.c.l.b16 %v361
        %v490 = vunpack.c.l.b16 %v362
        %v491 = vunpack.c.l.b16 %v363
        %v492 = vunpack.c.l.b16 %v364
        %v493 = vunpack.c.l.b16 %v365
        %v494 = vunpack.c.l.b16 %v366
        %v495 = vunpack.c.l.b16 %v367
        %v496 = vunpack.c.l.b16 %v368
        %v497 = vunpack.c.l.b16 %v369
        %v498 = vunpack.c.l.b16 %v370
        %v499 = vunpack.c.l.b16 %v371
        %v500 = vunpack.c.l.b16 %v372
        %v501 = vunpack.c.l.b16 %v373
        %v502 = vunpack.c.l.b16 %v374
        %v503 = vpack.c.b16 %v488, %v487
        %v504 = vpack.c.b16 %v490, %v489
        %v505 = vpack.c.b16 %v492, %v491
        %v506 = vpack.c.b16 %v494, %v493
        %v507 = vpack.c.b16 %v496, %v495
        %v508 = vpack.c.b16 %v498, %v497
        %v509 = vpack.c.b16 %v500, %v499
        %v510 = vpack.c.b16 %v502, %v501
        %519 = vmatprep.subr.bf16.mxu0 0
        %520 = vmatpush1.bf16.msra.mxu0 %v503
        %521 = vmatprep.subr.bf16.mxu0 0
        %522 = vmatpush1.bf16.msra.mxu0 %v504
        %523 = vmatprep.subr.bf16.mxu0 0
        %524 = vmatpush1.bf16.msra.mxu0 %v505
        %525 = vmatprep.subr.bf16.mxu0 0
        %526 = vmatpush1.bf16.msra.mxu0 %v506
        %527 = vmatprep.subr.bf16.mxu0 0
        %528 = vmatpush1.bf16.msra.mxu0 %v507
        %529 = vmatprep.subr.bf16.mxu0 0
        %530 = vmatpush1.bf16.msra.mxu0 %v508
        %531 = vmatprep.subr.bf16.mxu0 0
        %532 = vmatpush1.bf16.msra.mxu0 %v509
        %533 = vmatprep.subr.bf16.mxu0 0
        %534 = vmatpush1.bf16.msra.mxu0 %v510
        %535 = vmatprep.subr.bf16.mxu0 0
        %536 = vmatpush1.bf16.msra.mxu0 0
        %537 = vmatprep.subr.bf16.mxu0 0
        %538 = vmatpush1.bf16.msra.mxu0 0
        %539 = vmatprep.subr.bf16.mxu0 0
        %540 = vmatpush1.bf16.msra.mxu0 0
        %541 = vmatprep.subr.bf16.mxu0 0
        %542 = vmatpush1.bf16.msra.mxu0 0
        %543 = vmatprep.subr.bf16.mxu0 0
        %544 = vmatpush1.bf16.msra.mxu0 0
        %545 = vmatprep.subr.bf16.mxu0 0
        %546 = vmatpush1.bf16.msra.mxu0 0
        %547 = vmatprep.subr.bf16.mxu0 0
        %548 = vmatpush1.bf16.msra.mxu0 0
        %549 = vmatprep.subr.bf16.mxu0 0
        %550 = vmatpush1.bf16.msra.mxu0 0
        %551 = vmatprep.mubr.bf16.mxu0 0
        %552 = vmatmul.mubr.bf16.gmra.mrb[0].mxu0 %v439
        %v553 = vpop.f32.mrb[0].mxu0
        %v554 = vadd.f32 0.0, %v553
        %v555 = vpop.f32.mrb[0].mxu0
        %v556 = vpop.f32.mrb[0].mxu0
        %v557 = vadd.f32 0.0, %v556
        %v558 = vpop.f32.mrb[0].mxu0
        %559 = vmatprep.mubr.bf16.mxu0 0
        %560 = vmatmul.mubr.bf16.gmra.mrb[0].mxu0 %v440
        %v561 = vpop.f32.mrb[0].mxu0
        %v562 = vadd.f32 0.0, %v561
        %v563 = vpop.f32.mrb[0].mxu0
        %v564 = vpop.f32.mrb[0].mxu0
        %v565 = vadd.f32 0.0, %v564
        %v566 = vpop.f32.mrb[0].mxu0
        %567 = vmatprep.mubr.bf16.mxu0 0
        %568 = vmatmul.mubr.bf16.gmra.mrb[0].mxu0 %v441
        %v569 = vpop.f32.mrb[0].mxu0
        %v570 = vadd.f32 0.0, %v569
        %v571 = vpop.f32.mrb[0].mxu0
        %v572 = vpop.f32.mrb[0].mxu0
        %v573 = vadd.f32 0.0, %v572
        %v574 = vpop.f32.mrb[0].mxu0
        %575 = vmatprep.mubr.bf16.mxu0 0
        %576 = vmatmul.mubr.bf16.gmra.mrb[0].mxu0 %v442
        %v577 = vpop.f32.mrb[0].mxu0
        %v578 = vadd.f32 0.0, %v577
        %v579 = vpop.f32.mrb[0].mxu0
        %v580 = vpop.f32.mrb[0].mxu0
        %v581 = vadd.f32 0.0, %v580
        %v582 = vpop.f32.mrb[0].mxu0
        %583 = vmatprep.mubr.bf16.mxu0 0
        %584 = vmatmul.mubr.bf16.gmra.mrb[0].mxu0 %v443
        %v585 = vpop.f32.mrb[0].mxu0
        %v586 = vadd.f32 0.0, %v585
        %v587 = vpop.f32.mrb[0].mxu0
        %v588 = vpop.f32.mrb[0].mxu0
        %v589 = vadd.f32 0.0, %v588
        %v590 = vpop.f32.mrb[0].mxu0
        %591 = vmatprep.mubr.bf16.mxu0 0
        %592 = vmatmul.mubr.bf16.gmra.mrb[0].mxu0 %v444
        %v593 = vpop.f32.mrb[0].mxu0
        %v594 = vadd.f32 0.0, %v593
        %v595 = vpop.f32.mrb[0].mxu0
        %v596 = vpop.f32.mrb[0].mxu0
        %v597 = vadd.f32 0.0, %v596
        %v598 = vpop.f32.mrb[0].mxu0
        %599 = vmatprep.mubr.bf16.mxu0 0
        %600 = vmatmul.mubr.bf16.gmra.mrb[0].mxu0 %v445
        %v601 = vpop.f32.mrb[0].mxu0
        %v602 = vadd.f32 0.0, %v601
        %v603 = vpop.f32.mrb[0].mxu0
        %v604 = vpop.f32.mrb[0].mxu0
        %v605 = vadd.f32 0.0, %v604
        %v606 = vpop.f32.mrb[0].mxu0
        %607 = vmatprep.mubr.bf16.mxu0 0
        %608 = vmatmul.mubr.bf16.gmra.mrb[0].mxu0 %v446
        %v609 = vpop.f32.mrb[0].mxu0
        %v610 = vadd.f32 0.0, %v609
        %v611 = vpop.f32.mrb[0].mxu0
        %v612 = vpop.f32.mrb[0].mxu0
        %v613 = vadd.f32 0.0, %v612
        %v614 = vpop.f32.mrb[0].mxu0
        %615 = vmatprep.mubr.bf16.mxu0 0
        %616 = vmatmul.mubr.bf16.gmra.mrb[0].mxu0 %v447
        %v617 = vpop.f32.mrb[0].mxu0
        %v618 = vadd.f32 0.0, %v617
        %v619 = vpop.f32.mrb[0].mxu0
        %v620 = vpop.f32.mrb[0].mxu0
        %v621 = vadd.f32 0.0, %v620
        %v622 = vpop.f32.mrb[0].mxu0
        %623 = vmatprep.mubr.bf16.mxu0 0
        %624 = vmatmul.mubr.bf16.gmra.mrb[0].mxu0 %v448
        %v625 = vpop.f32.mrb[0].mxu0
        %v626 = vadd.f32 0.0, %v625
        %v627 = vpop.f32.mrb[0].mxu0
        %v628 = vpop.f32.mrb[0].mxu0
        %v629 = vadd.f32 0.0, %v628
        %v630 = vpop.f32.mrb[0].mxu0
        %631 = vmatprep.mubr.bf16.mxu0 0
        %632 = vmatmul.mubr.bf16.gmra.mrb[0].mxu0 %v449
        %v633 = vpop.f32.mrb[0].mxu0
        %v634 = vadd.f32 0.0, %v633
        %v635 = vpop.f32.mrb[0].mxu0
        %v636 = vpop.f32.mrb[0].mxu0
        %v637 = vadd.f32 0.0, %v636
        %v638 = vpop.f32.mrb[0].mxu0
        %639 = vmatprep.mubr.bf16.mxu0 0
        %640 = vmatmul.mubr.bf16.gmra.mrb[0].mxu0 %v450
        %v641 = vpop.f32.mrb[0].mxu0
        %v642 = vadd.f32 0.0, %v641
        %v643 = vpop.f32.mrb[0].mxu0
        %v644 = vpop.f32.mrb[0].mxu0
        %v645 = vadd.f32 0.0, %v644
        %v646 = vpop.f32.mrb[0].mxu0
        %647 = vmatprep.mubr.bf16.mxu0 0
        %648 = vmatmul.mubr.bf16.gmra.mrb[0].mxu0 %v451
        %v649 = vpop.f32.mrb[0].mxu0
        %v650 = vadd.f32 0.0, %v649
        %v651 = vpop.f32.mrb[0].mxu0
        %v652 = vpop.f32.mrb[0].mxu0
        %v653 = vadd.f32 0.0, %v652
        %v654 = vpop.f32.mrb[0].mxu0
        %655 = vmatprep.mubr.bf16.mxu0 0
        %656 = vmatmul.mubr.bf16.gmra.mrb[0].mxu0 %v452
        %v657 = vpop.f32.mrb[0].mxu0
        %v658 = vadd.f32 0.0, %v657
        %v659 = vpop.f32.mrb[0].mxu0
        %v660 = vpop.f32.mrb[0].mxu0
        %v661 = vadd.f32 0.0, %v660
        %v662 = vpop.f32.mrb[0].mxu0
        %663 = vmatprep.mubr.bf16.mxu0 0
        %664 = vmatmul.mubr.bf16.gmra.mrb[0].mxu0 %v453
        %v665 = vpop.f32.mrb[0].mxu0
        %v666 = vadd.f32 0.0, %v665
        %v667 = vpop.f32.mrb[0].mxu0
        %v668 = vpop.f32.mrb[0].mxu0
        %v669 = vadd.f32 0.0, %v668
        %v670 = vpop.f32.mrb[0].mxu0
        %671 = vmatprep.mubr.bf16.mxu0 0
        %672 = vmatmul.mubr.bf16.gmra.mrb[0].mxu0 %v454
        %v673 = vpop.f32.mrb[0].mxu0
        %v674 = vadd.f32 0.0, %v673
        %v675 = vpop.f32.mrb[0].mxu0
        %v676 = vpop.f32.mrb[0].mxu0
        %v677 = vadd.f32 0.0, %v676
        %v678 = vpop.f32.mrb[0].mxu0
        %679 = vdwg.mxu0
        %v680 = vadd.f32 %v295, %v554
        %v681 = vadd.f32 %v296, %v557
        %v682 = vadd.f32 %v297, %v562
        %v683 = vadd.f32 %v298, %v565
        %v684 = vadd.f32 %v299, %v570
        %v685 = vadd.f32 %v300, %v573
        %v686 = vadd.f32 %v301, %v578
        %v687 = vadd.f32 %v302, %v581
        %v688 = vadd.f32 %v303, %v586
        %v689 = vadd.f32 %v304, %v589
        %v690 = vadd.f32 %v305, %v594
        %v691 = vadd.f32 %v306, %v597
        %v692 = vadd.f32 %v307, %v602
        %v693 = vadd.f32 %v308, %v605
        %v694 = vadd.f32 %v309, %v610
        %v695 = vadd.f32 %v310, %v613
        %v696 = vadd.f32 %v311, %v618
        %v697 = vadd.f32 %v312, %v621
        %v698 = vadd.f32 %v313, %v626
        %v699 = vadd.f32 %v314, %v629
        %v700 = vadd.f32 %v315, %v634
        %v701 = vadd.f32 %v316, %v637
        %v702 = vadd.f32 %v317, %v642
        %v703 = vadd.f32 %v318, %v645
        %v704 = vadd.f32 %v319, %v650
        %v705 = vadd.f32 %v320, %v653
        %v706 = vadd.f32 %v321, %v658
        %v707 = vadd.f32 %v322, %v661
        %v708 = vadd.f32 %v323, %v666
        %v709 = vadd.f32 %v324, %v669
        %v710 = vadd.f32 %v325, %v674
        %v711 = vadd.f32 %v326, %v677
        %712 = vst [vmem:[#allocation2] sm:$0xff] %v680
        %713 = vst [vmem:[#allocation2 + $0x8] sm:$0xff] %v681
        %714 = vst [vmem:[#allocation2 + $0x10] sm:$0xff] %v682
        %715 = vst [vmem:[#allocation2 + $0x18] sm:$0xff] %v683
        %716 = vst [vmem:[#allocation2 + $0x20] sm:$0xff] %v684
        %717 = vst [vmem:[#allocation2 + $0x28] sm:$0xff] %v685
        %718 = vst [vmem:[#allocation2 + $0x30] sm:$0xff] %v686
        %719 = vst [vmem:[#allocation2 + $0x38] sm:$0xff] %v687
        %720 = vst [vmem:[#allocation2 + $0x40] sm:$0xff] %v688
        %721 = vst [vmem:[#allocation2 + $0x48] sm:$0xff] %v689
        %722 = vst [vmem:[#allocation2 + $0x50] sm:$0xff] %v690
        %723 = vst [vmem:[#allocation2 + $0x58] sm:$0xff] %v691
        %724 = vst [vmem:[#allocation2 + $0x60] sm:$0xff] %v692
        %725 = vst [vmem:[#allocation2 + $0x68] sm:$0xff] %v693
        %726 = vst [vmem:[#allocation2 + $0x70] sm:$0xff] %v694
        %727 = vst [vmem:[#allocation2 + $0x78] sm:$0xff] %v695
        %728 = vst [vmem:[#allocation2 + $0x80] sm:$0xff] %v696
        %729 = vst [vmem:[#allocation2 + $0x88] sm:$0xff] %v697
        %730 = vst [vmem:[#allocation2 + $0x90] sm:$0xff] %v698
        %731 = vst [vmem:[#allocation2 + $0x98] sm:$0xff] %v699
        %732 = vst [vmem:[#allocation2 + $0xa0] sm:$0xff] %v700
        %733 = vst [vmem:[#allocation2 + $0xa8] sm:$0xff] %v701
        %734 = vst [vmem:[#allocation2 + $0xb0] sm:$0xff] %v702
        %735 = vst [vmem:[#allocation2 + $0xb8] sm:$0xff] %v703
        %736 = vst [vmem:[#allocation2 + $0xc0] sm:$0xff] %v704
        %737 = vst [vmem:[#allocation2 + $0xc8] sm:$0xff] %v705
        %738 = vst [vmem:[#allocation2 + $0xd0] sm:$0xff] %v706
        %739 = vst [vmem:[#allocation2 + $0xd8] sm:$0xff] %v707
        %740 = vst [vmem:[#allocation2 + $0xe0] sm:$0xff] %v708
        %741 = vst [vmem:[#allocation2 + $0xe8] sm:$0xff] %v709
        %742 = vst [vmem:[#allocation2 + $0xf0] sm:$0xff] %v710
        %743 = vst [vmem:[#allocation2 + $0xf8] sm:$0xff] %v711
        // Predicated region
        $region37: #{_conv_apply.1} parent=31 // pred_check
          %p744 = pneg %p252
        $region38: #{_conv_apply.1} parent=31 // pred_check_branch
          %746 = sbr.rel (%p744) target = $region40
        $region39: #{_conv_apply.1} parent=31 // pred_region
          %v747 = vld [vmem:[#allocation2] sm:$0xff]
          %v748 = vld [vmem:[#allocation2 + $0x8] sm:$0xff]
          %v749 = vld [vmem:[#allocation2 + $0x10] sm:$0xff]
          %v750 = vld [vmem:[#allocation2 + $0x18] sm:$0xff]
          %v751 = vld [vmem:[#allocation2 + $0x20] sm:$0xff]
          %v752 = vld [vmem:[#allocation2 + $0x28] sm:$0xff]
          %v753 = vld [vmem:[#allocation2 + $0x30] sm:$0xff]
          %v754 = vld [vmem:[#allocation2 + $0x38] sm:$0xff]
          %v755 = vld [vmem:[#allocation2 + $0x40] sm:$0xff]
          %v756 = vld [vmem:[#allocation2 + $0x48] sm:$0xff]
          %v757 = vld [vmem:[#allocation2 + $0x50] sm:$0xff]
          %v758 = vld [vmem:[#allocation2 + $0x58] sm:$0xff]
          %v759 = vld [vmem:[#allocation2 + $0x60] sm:$0xff]
          %v760 = vld [vmem:[#allocation2 + $0x68] sm:$0xff]
          %v761 = vld [vmem:[#allocation2 + $0x70] sm:$0xff]
          %v762 = vld [vmem:[#allocation2 + $0x78] sm:$0xff]
          %v763 = vld [vmem:[#allocation2 + $0x80] sm:$0xff]
          %v764 = vld [vmem:[#allocation2 + $0x88] sm:$0xff]
          %v765 = vld [vmem:[#allocation2 + $0x90] sm:$0xff]
          %v766 = vld [vmem:[#allocation2 + $0x98] sm:$0xff]
          %v767 = vld [vmem:[#allocation2 + $0xa0] sm:$0xff]
          %v768 = vld [vmem:[#allocation2 + $0xa8] sm:$0xff]
          %v769 = vld [vmem:[#allocation2 + $0xb0] sm:$0xff]
          %v770 = vld [vmem:[#allocation2 + $0xb8] sm:$0xff]
          %v771 = vld [vmem:[#allocation2 + $0xc0] sm:$0xff]
          %v772 = vld [vmem:[#allocation2 + $0xc8] sm:$0xff]
          %v773 = vld [vmem:[#allocation2 + $0xd0] sm:$0xff]
          %v774 = vld [vmem:[#allocation2 + $0xd8] sm:$0xff]
          %v775 = vld [vmem:[#allocation2 + $0xe0] sm:$0xff]
          %v776 = vld [vmem:[#allocation2 + $0xe8] sm:$0xff]
          %v777 = vld [vmem:[#allocation2 + $0xf0] sm:$0xff]
          %v778 = vld [vmem:[#allocation2 + $0xf8] sm:$0xff]
          %v779 = vmax.f32 %v747, 0.0
          %v780 = vmax.f32 %v748, 0.0
          %v781 = vmax.f32 %v749, 0.0
          %v782 = vmax.f32 %v750, 0.0
          %v783 = vmax.f32 %v751, 0.0
          %v784 = vmax.f32 %v752, 0.0
          %v785 = vmax.f32 %v753, 0.0
          %v786 = vmax.f32 %v754, 0.0
          %v787 = vmax.f32 %v755, 0.0
          %v788 = vmax.f32 %v756, 0.0
          %v789 = vmax.f32 %v757, 0.0
          %v790 = vmax.f32 %v758, 0.0
          %v791 = vmax.f32 %v759, 0.0
          %v792 = vmax.f32 %v760, 0.0
          %v793 = vmax.f32 %v761, 0.0
          %v794 = vmax.f32 %v762, 0.0
          %v795 = vmax.f32 %v763, 0.0
          %v796 = vmax.f32 %v764, 0.0
          %v797 = vmax.f32 %v765, 0.0
          %v798 = vmax.f32 %v766, 0.0
          %v799 = vmax.f32 %v767, 0.0
          %v800 = vmax.f32 %v768, 0.0
          %v801 = vmax.f32 %v769, 0.0
          %v802 = vmax.f32 %v770, 0.0
          %v803 = vmax.f32 %v771, 0.0
          %v804 = vmax.f32 %v772, 0.0
          %v805 = vmax.f32 %v773, 0.0
          %v806 = vmax.f32 %v774, 0.0
          %v807 = vmax.f32 %v775, 0.0
          %v808 = vmax.f32 %v776, 0.0
          %v809 = vmax.f32 %v777, 0.0
          %v810 = vmax.f32 %v778, 0.0
          %v811 = vpack.c.bf16 %v780, %v779
          %v812 = vpack.c.bf16 %v782, %v781
          %v813 = vpack.c.bf16 %v784, %v783
          %v814 = vpack.c.bf16 %v786, %v785
          %v815 = vpack.c.bf16 %v788, %v787
          %v816 = vpack.c.bf16 %v790, %v789
          %v817 = vpack.c.bf16 %v792, %v791
          %v818 = vpack.c.bf16 %v794, %v793
          %v819 = vpack.c.bf16 %v796, %v795
          %v820 = vpack.c.bf16 %v798, %v797
          %v821 = vpack.c.bf16 %v800, %v799
          %v822 = vpack.c.bf16 %v802, %v801
          %v823 = vpack.c.bf16 %v804, %v803
          %v824 = vpack.c.bf16 %v806, %v805
          %v825 = vpack.c.bf16 %v808, %v807
          %v826 = vpack.c.bf16 %v810, %v809
          %v843 = vunpack.c.l.b16 %v811
          %v844 = vunpack.c.h.b16 %v811
          %v845 = vunpack.c.l.b16 %v812
          %v846 = vunpack.c.h.b16 %v812
          %v847 = vunpack.c.l.b16 %v813
          %v848 = vunpack.c.h.b16 %v813
          %v849 = vunpack.c.l.b16 %v814
          %v850 = vunpack.c.h.b16 %v814
          %v851 = vunpack.c.l.b16 %v815
          %v852 = vunpack.c.h.b16 %v815
          %v853 = vunpack.c.l.b16 %v816
          %v854 = vunpack.c.h.b16 %v816
          %v855 = vunpack.c.l.b16 %v817
          %v856 = vunpack.c.h.b16 %v817
          %v857 = vunpack.c.l.b16 %v818
          %v858 = vunpack.c.h.b16 %v818
          %v859 = vunpack.c.l.b16 %v819
          %v860 = vunpack.c.h.b16 %v819
          %v861 = vunpack.c.l.b16 %v820
          %v862 = vunpack.c.h.b16 %v820
          %v863 = vunpack.c.l.b16 %v821
          %v864 = vunpack.c.h.b16 %v821
          %v865 = vunpack.c.l.b16 %v822
          %v866 = vunpack.c.h.b16 %v822
          %v867 = vunpack.c.l.b16 %v823
          %v868 = vunpack.c.h.b16 %v823
          %v869 = vunpack.c.l.b16 %v824
          %v870 = vunpack.c.h.b16 %v824
          %v871 = vunpack.c.l.b16 %v825
          %v872 = vunpack.c.h.b16 %v825
          %v873 = vunpack.c.l.b16 %v826
          %v874 = vunpack.c.h.b16 %v826
          %v875 = vpack.c.b16 %v843, %v843
          %v876 = vpack.c.b16 %v844, %v844
          %v877 = vpack.c.b16 %v845, %v845
          %v878 = vpack.c.b16 %v846, %v846
          %v879 = vpack.c.b16 %v847, %v847
          %v880 = vpack.c.b16 %v848, %v848
          %v881 = vpack.c.b16 %v849, %v849
          %v882 = vpack.c.b16 %v850, %v850
          %v883 = vpack.c.b16 %v851, %v851
          %v884 = vpack.c.b16 %v852, %v852
          %v885 = vpack.c.b16 %v853, %v853
          %v886 = vpack.c.b16 %v854, %v854
          %v887 = vpack.c.b16 %v855, %v855
          %v888 = vpack.c.b16 %v856, %v856
          %v889 = vpack.c.b16 %v857, %v857
          %v890 = vpack.c.b16 %v858, %v858
          %v891 = vpack.c.b16 %v859, %v859
          %v892 = vpack.c.b16 %v860, %v860
          %v893 = vpack.c.b16 %v861, %v861
          %v894 = vpack.c.b16 %v862, %v862
          %v895 = vpack.c.b16 %v863, %v863
          %v896 = vpack.c.b16 %v864, %v864
          %v897 = vpack.c.b16 %v865, %v865
          %v898 = vpack.c.b16 %v866, %v866
          %v899 = vpack.c.b16 %v867, %v867
          %v900 = vpack.c.b16 %v868, %v868
          %v901 = vpack.c.b16 %v869, %v869
          %v902 = vpack.c.b16 %v870, %v870
          %v903 = vpack.c.b16 %v871, %v871
          %v904 = vpack.c.b16 %v872, %v872
          %v905 = vpack.c.b16 %v873, %v873
          %v906 = vpack.c.b16 %v874, %v874
          %939 = vst [vmem:[%s228] sm:$0xf] %v875
          %940 = vst [vmem:[%s228 + $0x4] sm:$0xf] %v876
          %941 = vst [vmem:[%s228 + $0x8] sm:$0xf] %v877
          %942 = vst [vmem:[%s228 + $0xc] sm:$0xf] %v878
          %943 = vst [vmem:[%s228 + $0x10] sm:$0xf] %v879
          %944 = vst [vmem:[%s228 + $0x14] sm:$0xf] %v880
          %945 = vst [vmem:[%s228 + $0x18] sm:$0xf] %v881
          %946 = vst [vmem:[%s228 + $0x1c] sm:$0xf] %v882
          %947 = vst [vmem:[%s228 + $0x20] sm:$0xf] %v883
          %948 = vst [vmem:[%s228 + $0x24] sm:$0xf] %v884
          %949 = vst [vmem:[%s228 + $0x28] sm:$0xf] %v885
          %950 = vst [vmem:[%s228 + $0x2c] sm:$0xf] %v886
          %951 = vst [vmem:[%s228 + $0x30] sm:$0xf] %v887
          %952 = vst [vmem:[%s228 + $0x34] sm:$0xf] %v888
          %953 = vst [vmem:[%s228 + $0x38] sm:$0xf] %v889
          %954 = vst [vmem:[%s228 + $0x3c] sm:$0xf] %v890
          %955 = vst [vmem:[%s228 + $0x40] sm:$0xf] %v891
          %956 = vst [vmem:[%s228 + $0x44] sm:$0xf] %v892
          %957 = vst [vmem:[%s228 + $0x48] sm:$0xf] %v893
          %958 = vst [vmem:[%s228 + $0x4c] sm:$0xf] %v894
          %959 = vst [vmem:[%s228 + $0x50] sm:$0xf] %v895
          %960 = vst [vmem:[%s228 + $0x54] sm:$0xf] %v896
          %961 = vst [vmem:[%s228 + $0x58] sm:$0xf] %v897
          %962 = vst [vmem:[%s228 + $0x5c] sm:$0xf] %v898
          %963 = vst [vmem:[%s228 + $0x60] sm:$0xf] %v899
          %964 = vst [vmem:[%s228 + $0x64] sm:$0xf] %v900
          %965 = vst [vmem:[%s228 + $0x68] sm:$0xf] %v901
          %966 = vst [vmem:[%s228 + $0x6c] sm:$0xf] %v902
          %967 = vst [vmem:[%s228 + $0x70] sm:$0xf] %v903
          %968 = vst [vmem:[%s228 + $0x74] sm:$0xf] %v904
          %969 = vst [vmem:[%s228 + $0x78] sm:$0xf] %v905
          %970 = vst [vmem:[%s228 + $0x7c] sm:$0xf] %v906
        $region40: #{_conv_apply.1} parent=31 // pred_fallthru
          _
        %s971 = sand.u32 %s128, 1
        %s972 = scalar_lea.sflag [#allocation4], %s971
        %s973 = sand.u32 %s128, 1
        %s974 = smul.addr %s973, 128
        %s975 = scalar_lea.vmem [#allocation3], %s974
        // Predicated region
        $region41: #{_conv_apply.1} parent=31 // pred_check
          %p976 = pneg %p138
        $region42: #{_conv_apply.1} parent=31 // pred_check_branch
          %978 = sbr.rel (%p976) target = $region44
        $region43: #{_conv_apply.1} parent=31 // pred_region
          %s979 = smul.u32 32, %s22
          %s981 = ssub.s32 2048, 2048
          %982 = vsyncadd %s972, %s981
          %s983 = sadd.s32 %s23, %s979
          %s984 = smul.addr %s983, 64
          %s985 = scalar_lea.hbm %s3, %s984
          %s986 = sshll.u32 %s975, 4
          %s987 = int_to_ptr.vmem [resolvable:$true] %s986
          %992 = dma.vmem_to_hbm [thread:$0]  %s987, 2048, %s985, %s972, 64, 64, 4
        $region44: #{_conv_apply.1} parent=31 // pred_fallthru
          _
      $region32: #{_conv_apply.1} parent=5 // pred_fallthru
        _
      %p993 = scmp.le.s32.totalorder 2, %s12
      // Predicated region
      $region45: #{_conv_apply.1} parent=5 // pred_check
        %p994 = pneg %p993
      $region46: #{_conv_apply.1} parent=5 // pred_check_branch
        %996 = sbr.rel (%p994) target = $region48
      $region47: #{_conv_apply.1} parent=5 // pred_region
        %s997 = ssub.s32 %s12, 2
        // Predicated region
        $region49: #{_conv_apply.1} parent=47 // pred_check
          %p998 = pneg %p144
        $region50: #{_conv_apply.1} parent=47 // pred_check_branch
          %1000 = sbr.rel (%p998) target = $region52
        $region51: #{_conv_apply.1} parent=47 // pred_region
          %s1001 = sand.u32 %s129, 1
          %s1002 = scalar_lea.sflag [#allocation4], %s1001
          %s1003 = sand.u32 %s129, 1
          %s1004 = smul.addr %s1003, 128
          %s1005 = scalar_lea.vmem [#allocation3], %s1004
          %1006 = dma.done %s1002, 2048
        $region52: #{_conv_apply.1} parent=47 // pred_fallthru
          _
      $region48: #{_conv_apply.1} parent=5 // pred_fallthru
        _
    $region6: #{_conv_apply.1} parent=1 // loop_footer
      %s16 = sadd.s32 1, %s12
    $region7: #{_conv_apply.1} parent=1 // loop_footer_branch
      %11 = sbr.rel target = $region3
    $region8: #{_conv_apply.1} parent=1 // loop_exit
      _
    %1007 = vsyncpa [#allocation4], 1
    %s1008 = scalar_lea.sflag [#allocation4], 1
    %1009 = vsyncpa %s1008, 1

</llo_original>
